<compile_context>
chip_gen: v6e
topology: v6e:2x2x1
jax: 0.10.0
libtpu: 0.0.40
codegen_flags: <defaults>
</compile_context>

<pallas_src>
import math
import functools

import jax
import jax.numpy as jnp
from jax import lax
from jax.experimental import pallas as pl
from jax.experimental.pallas import tpu as pltpu


def _adapter_kernel(*refs, use_ln, use_pos, num_x, c0, approx_gelu):
    """One (token-tile, batch) step: LN -> +pos -> linear1 -> GELU -> linear2.

    When num_x > 1 (deep_extract) the feature axis is split across `num_x`
    separate x refs of width c0 each; linear1 is computed as num_x partial dots
    against row-slices of w1.
    """
    idx = 0
    x_refs = refs[idx:idx + num_x]
    idx += num_x
    gamma_ref = beta_ref = pos_ref = None
    if use_ln:
        gamma_ref, beta_ref = refs[idx], refs[idx + 1]
        idx += 2
    if use_pos:
        pos_ref = refs[idx]
        idx += 1
    w1_ref, b1_ref, w2_ref, b2_ref, o_ref = refs[idx:idx + 5]

    xs = [r[...].astype(jnp.float32) for r in x_refs]          # each (tT, c0)
    n_feat = num_x * c0

    if use_ln:
        # Two-pass (centered) LayerNorm statistics over the full (possibly
        # split) feature axis; eps=1e-5, biased variance -> matches torch.
        mean = sum(jnp.sum(x, axis=-1, keepdims=True) for x in xs) * (1.0 / n_feat)
        var = sum(jnp.sum((x - mean) ** 2, axis=-1, keepdims=True)
                  for x in xs) * (1.0 / n_feat)
        inv = lax.rsqrt(var + 1e-5)
        gamma = gamma_ref[...]                                  # (1, n_feat) f32
        beta = beta_ref[...]
        xs = [(xs[i] - mean) * inv * gamma[:, i * c0:(i + 1) * c0]
              + beta[:, i * c0:(i + 1) * c0] for i in range(num_x)]

    if use_pos:
        pos = pos_ref[...].astype(jnp.float32)                  # (tT, n_feat)
        xs = [xs[i] + pos[:, i * c0:(i + 1) * c0] for i in range(num_x)]

    # linear1: bf16 operands, f32 accumulation on the MXU; deep_extract is
    # num_x partial dots against C0-row slices of w1 (no concat materialized).
    h = None
    for i in range(num_x):
        w1_blk = w1_ref[...] if num_x == 1 else w1_ref[i * c0:(i + 1) * c0, :]
        p = jnp.dot(xs[i].astype(jnp.bfloat16), w1_blk,
                    preferred_element_type=jnp.float32)
        h = p if h is None else h + p
    h = h + b1_ref[...]

    if approx_gelu:
        # tanh approximation (EUP path) -- optional; default is exact erf to
        # match torch.nn.GELU().
        k = math.sqrt(2.0 / math.pi)
        h = 0.5 * h * (1.0 + jnp.tanh(k * (h + 0.044715 * h * h * h)))
    else:
        h = 0.5 * h * (1.0 + lax.erf(h * (1.0 / math.sqrt(2.0))))

    # linear2: bf16 operands, f32 accumulation
    y = jnp.dot(h.astype(jnp.bfloat16), w2_ref[...],
                preferred_element_type=jnp.float32) + b2_ref[...]

    o_ref[...] = y.astype(o_ref.dtype)                          # dense (tT, D) store


def _round_up(x, m):
    return (x + m - 1) // m * m


def _choose_token_tile(T, max_tile=256):
    """Token-tile heuristic: multiple of 8 (vreg sublanes), 128-aligned when it
    is large (MXU M-dim, important on v5e's 128-wide MXU), capped at 256, and
    chosen so there are >=2 token tiles whenever T allows it (keeps v7x's two
    TensorCores busy and the DMA pipeline overlapped). The grid uses cdiv and
    the wrapper zero-pads the tail tile, so T need not divide the tile."""
    n = max(2, _round_up(T, max_tile) // max_tile)   # target >=2 token tiles
    tile = _round_up(max(1, -(-T // n)), 8)
    if tile > 128:
        tile = min(_round_up(tile, 128), max_tile)
    return max(8, min(tile, max_tile))


def _vmem_capacity_bytes(default=64 * 2 ** 20):
    """Per-core VMEM capacity (chip-aware: 128 MiB on v5e/v6e, 64 MiB on v7x)."""
    try:
        info = pltpu.get_tpu_info()
        cap = getattr(info, "vmem_capacity_bytes", None)
        if cap:
            return int(cap)
    except Exception:
        pass
    return default


def _pad_axis(a, new_size, axis):
    if a.shape[axis] == new_size:
        return a
    pad = [(0, 0)] * a.ndim
    pad[axis] = (0, new_size - a.shape[axis])
    return jnp.pad(a, pad)


def image_adapter_forward(vision_hidden, params, *, ln1, pos_emb, deep_extract,
                          out_dtype=jnp.bfloat16, approx_gelu=False):
    """vision_hidden: list/tuple of [B, T, C0] hidden states (selected layers used).

    Hot path (LN, pos-emb add, two matmuls, GELU) runs in Pallas; the cheap
    (B, 2, D) learned-token prepend/append stays in JAX so the kernel's store
    path is sublane/lane-aligned.
    """
    if deep_extract:
        xs = [vision_hidden[-2], vision_hidden[3], vision_hidden[7],
              vision_hidden[13], vision_hidden[20]]
    else:
        xs = [vision_hidden[-2]]
    num_x = len(xs)
    B, T, C0 = xs[0].shape
    C = num_x * C0
    D = params["w1"].shape[1]

    tT = _choose_token_tile(T)
    nT = pl.cdiv(T, tT)
    T_pad = nT * tT
    if T_pad != T:
        xs = [_pad_axis(x, T_pad, axis=1) for x in xs]

    # bf16 weights: native MXU path, half the HBM/VMEM traffic. Biases stay f32.
    w1 = params["w1"].astype(jnp.bfloat16)
    w2 = params["w2"].astype(jnp.bfloat16)
    b1 = params["b1"].reshape(1, D).astype(jnp.float32)
    b2 = params["b2"].reshape(1, D).astype(jnp.float32)

    # Constant-index operands: fetched once, single VMEM buffer.
    const = dict(pipeline_mode=pl.Buffered(1))

    args = list(xs)
    in_specs = [pl.BlockSpec((None, tT, C0), lambda t, b: (b, t, 0)) for _ in xs]
    if ln1:
        args += [params["ln_gamma"].reshape(1, C).astype(jnp.float32),
                 params["ln_beta"].reshape(1, C).astype(jnp.float32)]
        in_specs += [pl.BlockSpec((1, C), lambda t, b: (0, 0), **const),
                     pl.BlockSpec((1, C), lambda t, b: (0, 0), **const)]
    if pos_emb:
        # bf16 pos stream (half the DMA); token tile is the OUTER grid axis so
        # the pos tile stays resident across the inner batch axis.
        pos = _pad_axis(params["pos_emb"].astype(jnp.bfloat16), T_pad, axis=0)
        args.append(pos)
        in_specs.append(pl.BlockSpec((tT, C), lambda t, b: (t, 0)))
    args += [w1, b1, w2, b2]
    in_specs += [
        pl.BlockSpec((C, D), lambda t, b: (0, 0), **const),   # w1 resident, 1 buffer
        pl.BlockSpec((1, D), lambda t, b: (0, 0), **const),   # b1
        pl.BlockSpec((D, D), lambda t, b: (0, 0), **const),   # w2 resident, 1 buffer
        pl.BlockSpec((1, D), lambda t, b: (0, 0), **const),   # b2
    ]

    out_isize = jnp.dtype(out_dtype).itemsize
    x_isize = jnp.dtype(xs[0].dtype).itemsize

    # VMEM budget matching actual buffer counts: resident weights single-buffered,
    # streamed tiles (x, pos, out) double-buffered by default.
    resident = C * D * 2 + D * D * 2 + 2 * D * 4 + (2 * C * 4 if ln1 else 0)
    per_step = (num_x * tT * C0 * x_isize
                + (tT * C * 2 if pos_emb else 0)
                + tT * D * out_isize)
    need = resident + 2 * per_step
    cap = _vmem_capacity_bytes()
    vmem_limit = int(min(int(0.9 * cap), max(need + (4 << 20), 32 << 20)))
    # TODO(synk): stream w2 (and w1 for deep_extract) column tiles from HBM via
    # pltpu.emit_pipeline when the resident bf16 weights alone approach the cap.

    flops = 2 * B * T_pad * (C * D + D * D)
    transcendentals = B * T_pad * D                    # erf/tanh per GELU element
    bytes_accessed = (B * T_pad * C * x_isize + C * D * 2 + D * D * 2 + 2 * D * 4
                      + (T_pad * C * 2 if pos_emb else 0) + (2 * C * 4 if ln1 else 0)
                      + B * T_pad * D * out_isize)

    kernel = functools.partial(_adapter_kernel, use_ln=ln1, use_pos=pos_emb,
                               num_x=num_x, c0=C0, approx_gelu=approx_gelu)

    y = pl.pallas_call(
        kernel,
        out_shape=jax.ShapeDtypeStruct((B, T_pad, D), out_dtype),
        grid_spec=pltpu.PrefetchScalarGridSpec(
            num_scalar_prefetch=0,
            grid=(nT, B),                               # token tiles outer, batch inner
            in_specs=in_specs,
            out_specs=pl.BlockSpec((None, tT, D), lambda t, b: (b, t, 0)),
        ),
        compiler_params=pltpu.CompilerParams(
            dimension_semantics=("parallel", "parallel"),
            vmem_limit_bytes=vmem_limit,
        ),
        cost_estimate=pl.CostEstimate(flops=int(flops),
                                      transcendentals=int(transcendentals),
                                      bytes_accessed=int(bytes_accessed)),
    )(*args)

    if T_pad != T:
        y = y[:, :T, :]                                 # drop padded token rows

    # Prepend/append the two learned tokens in JAX (cheap, keeps the kernel's
    # store path sublane/lane-aligned).
    tok = params["other_tokens"].astype(out_dtype)      # (3, D); rows 0,1 used
    tok0 = jnp.broadcast_to(tok[0][None, None, :], (B, 1, D))
    tok1 = jnp.broadcast_to(tok[1][None, None, :], (B, 1, D))
    return jnp.concatenate((tok0, y, tok1), axis=1)


def _reference_forward(vision_hidden, params, *, ln1, pos_emb, deep_extract):
    """Pure-JAX f32 reference mirroring the PyTorch forward, for validation."""
    if deep_extract:
        x = jnp.concatenate(
            (vision_hidden[-2], vision_hidden[3], vision_hidden[7],
             vision_hidden[13], vision_hidden[20]), axis=-1)
    else:
        x = vision_hidden[-2]
    if ln1:
        mean = jnp.mean(x, axis=-1, keepdims=True)
        var = jnp.mean((x - mean) ** 2, axis=-1, keepdims=True)
        x = (x - mean) / jnp.sqrt(var + 1e-5) * params["ln_gamma"] + params["ln_beta"]
    if pos_emb:
        x = x + params["pos_emb"]
    h = x @ params["w1"] + params["b1"]
    h = jax.nn.gelu(h, approximate=False)
    y = h @ params["w2"] + params["b2"]
    B = x.shape[0]
    tok0 = jnp.broadcast_to(params["other_tokens"][0][None, None, :], (B, 1, y.shape[-1]))
    tok1 = jnp.broadcast_to(params["other_tokens"][1][None, None, :], (B, 1, y.shape[-1]))
    return jnp.concatenate((tok0, y, tok1), axis=1)


def init_params(key, input_features, output_features, num_image_tokens, *,
                deep_extract=False):
    """Deterministic synthetic params matching the nn.Module's shapes."""
    if deep_extract:
        input_features = input_features * 5             # as in the torch __init__
    ks = jax.random.split(key, 6)
    lim1 = 1.0 / math.sqrt(input_features)
    lim2 = 1.0 / math.sqrt(output_features)
    return {
        "ln_gamma": jnp.ones((input_features,), jnp.float32),
        "ln_beta": jnp.zeros((input_features,), jnp.float32),
        # nn.Parameter(torch.zeros(...)) in __init__; random here so the add is exercised
        "pos_emb": 0.02 * jax.random.normal(ks[0], (num_image_tokens, input_features), jnp.float32),
        "w1": jax.random.uniform(ks[1], (input_features, output_features), jnp.float32, -lim1, lim1),
        "b1": jax.random.uniform(ks[2], (output_features,), jnp.float32, -lim1, lim1),
        "w2": jax.random.uniform(ks[3], (output_features, output_features), jnp.float32, -lim2, lim2),
        "b2": jax.random.uniform(ks[4], (output_features,), jnp.float32, -lim2, lim2),
        "other_tokens": 0.02 * jax.random.normal(ks[5], (3, output_features), jnp.float32),  # Embedding(3, D)
    }


if __name__ == "__main__":
    B, T = 2, 16                # batch, num_image_tokens
    C_IN, D_OUT = 128, 128      # input_features, output_features (lane-aligned, still small)

    key = jax.random.PRNGKey(0)
    k_params, k_x, k_params_d, k_x2, k_xd = jax.random.split(key, 5)

    # bf16 matmul operands + bf16 output vs f32 reference -> small deviation
    TOL = 8e-2

    # --- config 1: ln1=True, pos_emb=True, deep_extract=False ------------------
    params = init_params(k_params, C_IN, D_OUT, T)
    n_layers = 3
    vision_hidden = [jax.random.normal(k, (B, T, C_IN), jnp.float32)
                     for k in jax.random.split(k_x, n_layers)]
    out = image_adapter_forward(vision_hidden, params,
                                ln1=True, pos_emb=True, deep_extract=False)
    out = jax.block_until_ready(out)
    ref = _reference_forward(vision_hidden, params,
                             ln1=True, pos_emb=True, deep_extract=False)
    assert out.shape == (B, T + 2, D_OUT), out.shape
    err = float(jnp.max(jnp.abs(out.astype(jnp.float32) - ref)))
    assert err < TOL, err

    # --- config 2: ln1=False, pos_emb=False; T not tile-divisible (padding path)
    T2 = 12
    vision_hidden2 = [jax.random.normal(k, (B, T2, C_IN), jnp.float32)
                      for k in jax.random.split(k_x2, n_layers)]
    out2 = image_adapter_forward(vision_hidden2, params,
                                 ln1=False, pos_emb=False, deep_extract=False)
    out2 = jax.block_until_ready(out2)
    ref2 = _reference_forward(vision_hidden2, params,
                              ln1=False, pos_emb=False, deep_extract=False)
    assert out2.shape == (B, T2 + 2, D_OUT), out2.shape
    err2 = float(jnp.max(jnp.abs(out2.astype(jnp.float32) - ref2)))
    assert err2 < TOL, err2

    # --- config 3: deep_extract=True (fused 5-way feature split, >=22 layers) --
    params_d = init_params(k_params_d, C_IN, D_OUT, T, deep_extract=True)
    n_layers_d = 22
    vision_hidden_d = [jax.random.normal(k, (B, T, C_IN), jnp.float32)
                       for k in jax.random.split(k_xd, n_layers_d)]
    out3 = image_adapter_forward(vision_hidden_d, params_d,
                                 ln1=True, pos_emb=True, deep_extract=True)
    out3 = jax.block_until_ready(out3)
    ref3 = _reference_forward(vision_hidden_d, params_d,
                              ln1=True, pos_emb=True, deep_extract=True)
    assert out3.shape == (B, T + 2, D_OUT), out3.shape
    err3 = float(jnp.max(jnp.abs(out3.astype(jnp.float32) - ref3)))
    assert err3 < TOL, err3

    print("KERNEL_OK")
</pallas_src>

<mosaic_0001>
module attributes {stable_mosaic.version = 11 : i64} {
  func.func @_adapter_kernel(%arg0: i32, %arg1: i32, %arg2: memref<1x8x128xf32, #tpu.memory_space<vmem>>, %arg3: memref<1x128xf32, #tpu.memory_space<vmem>>, %arg4: memref<1x128xf32, #tpu.memory_space<vmem>>, %arg5: memref<8x128xbf16, #tpu.memory_space<vmem>>, %arg6: memref<128x128xbf16, #tpu.memory_space<vmem>>, %arg7: memref<1x128xf32, #tpu.memory_space<vmem>>, %arg8: memref<128x128xbf16, #tpu.memory_space<vmem>>, %arg9: memref<1x128xf32, #tpu.memory_space<vmem>>, %arg10: memref<1x8x128xbf16, #tpu.memory_space<vmem>>) attributes {dimension_semantics = [#tpu.dimension_semantics<parallel>, #tpu.dimension_semantics<parallel>], iteration_bounds = array<i64: 2, 2>, scalar_prefetch = 0 : i64, scratch_operands = 0 : i64, tpu.core_type = #tpu.core_type<tc>, window_params = [{transform_indices = @transform_0, window_bounds = array<i64: 1, 8, 128>}, {pipeline_mode = #tpu.pipeline_mode<synchronous>, transform_indices = @transform_1, window_bounds = array<i64: 1, 128>}, {pipeline_mode = #tpu.pipeline_mode<synchronous>, transform_indices = @transform_2, window_bounds = array<i64: 1, 128>}, {transform_indices = @transform_3, window_bounds = array<i64: 8, 128>}, {pipeline_mode = #tpu.pipeline_mode<synchronous>, transform_indices = @transform_4, window_bounds = array<i64: 128, 128>}, {pipeline_mode = #tpu.pipeline_mode<synchronous>, transform_indices = @transform_5, window_bounds = array<i64: 1, 128>}, {pipeline_mode = #tpu.pipeline_mode<synchronous>, transform_indices = @transform_6, window_bounds = array<i64: 128, 128>}, {pipeline_mode = #tpu.pipeline_mode<synchronous>, transform_indices = @transform_7, window_bounds = array<i64: 1, 128>}, {transform_indices = @transform_8, window_bounds = array<i64: 1, 8, 128>}]} {
    %c0 = arith.constant 0 : index
    %c0_0 = arith.constant 0 : index
    %c0_1 = arith.constant 0 : index
    %0 = vector.load %arg2[%c0, %c0_0, %c0_1] : memref<1x8x128xf32, #tpu.memory_space<vmem>>, vector<1x8x128xf32>
    %1 = vector.shape_cast %0 : vector<1x8x128xf32> to vector<8x128xf32>
    %cst = arith.constant dense<0.000000e+00> : vector<8xf32>
    %2 = vector.multi_reduction <add>, %1, %cst [1] : vector<8x128xf32> to vector<8xf32>
    %3 = vector.shape_cast %2 : vector<8xf32> to vector<8x1xf32>
    %cst_2 = arith.constant 0.000000e+00 : f32
    %4 = vector.broadcast %cst_2 : f32 to vector<8x1xf32>
    %5 = arith.addf %4, %3 : vector<8x1xf32>
    %cst_3 = arith.constant 7.812500e-03 : f32
    %6 = vector.broadcast %cst_3 : f32 to vector<8x1xf32>
    %7 = arith.mulf %5, %6 : vector<8x1xf32>
    %8 = vector.broadcast %7 : vector<8x1xf32> to vector<8x128xf32>
    %9 = arith.subf %1, %8 : vector<8x128xf32>
    %10 = arith.mulf %9, %9 : vector<8x128xf32>
    %cst_4 = arith.constant dense<0.000000e+00> : vector<8xf32>
    %11 = vector.multi_reduction <add>, %10, %cst_4 [1] : vector<8x128xf32> to vector<8xf32>
    %12 = vector.shape_cast %11 : vector<8xf32> to vector<8x1xf32>
    %cst_5 = arith.constant 0.000000e+00 : f32
    %13 = vector.broadcast %cst_5 : f32 to vector<8x1xf32>
    %14 = arith.addf %13, %12 : vector<8x1xf32>
    %cst_6 = arith.constant 7.812500e-03 : f32
    %15 = vector.broadcast %cst_6 : f32 to vector<8x1xf32>
    %16 = arith.mulf %14, %15 : vector<8x1xf32>
    %cst_7 = arith.constant 9.99999974E-6 : f32
    %17 = vector.broadcast %cst_7 : f32 to vector<8x1xf32>
    %18 = arith.addf %16, %17 : vector<8x1xf32>
    %19 = math.rsqrt %18 : vector<8x1xf32>
    %c0_8 = arith.constant 0 : index
    %c0_9 = arith.constant 0 : index
    %20 = vector.load %arg3[%c0_8, %c0_9] : memref<1x128xf32, #tpu.memory_space<vmem>>, vector<1x128xf32>
    %c0_10 = arith.constant 0 : index
    %c0_11 = arith.constant 0 : index
    %21 = vector.load %arg4[%c0_10, %c0_11] : memref<1x128xf32, #tpu.memory_space<vmem>>, vector<1x128xf32>
    %22 = vector.broadcast %7 : vector<8x1xf32> to vector<8x128xf32>
    %23 = arith.subf %1, %22 : vector<8x128xf32>
    %24 = vector.broadcast %19 : vector<8x1xf32> to vector<8x128xf32>
    %25 = arith.mulf %23, %24 : vector<8x128xf32>
    %26 = vector.broadcast %20 : vector<1x128xf32> to vector<8x128xf32>
    %27 = arith.mulf %25, %26 : vector<8x128xf32>
    %28 = vector.broadcast %21 : vector<1x128xf32> to vector<8x128xf32>
    %29 = arith.addf %27, %28 : vector<8x128xf32>
    %c0_12 = arith.constant 0 : index
    %c0_13 = arith.constant 0 : index
    %30 = vector.load %arg5[%c0_12, %c0_13] : memref<8x128xbf16, #tpu.memory_space<vmem>>, vector<8x128xbf16>
    %31 = arith.extf %30 : vector<8x128xbf16> to vector<8x128xf32>
    %32 = arith.addf %29, %31 : vector<8x128xf32>
    %c0_14 = arith.constant 0 : index
    %c0_15 = arith.constant 0 : index
    %33 = vector.load %arg6[%c0_14, %c0_15] : memref<128x128xbf16, #tpu.memory_space<vmem>>, vector<128x128xbf16>
    %34 = arith.truncf %32 : vector<8x128xf32> to vector<8x128xbf16>
    %cst_16 = arith.constant dense<0.000000e+00> : vector<8x128xf32>
    %35 = tpu.matmul %34, %33, %cst_16 {dimension_numbers = #tpu.dot_dimension_numbers<[1], [0], [0], [1], [0, 0, 1, 1], [], []>} : vector<8x128xbf16>, vector<128x128xbf16>, vector<8x128xf32> -> vector<8x128xf32>
    %c0_17 = arith.constant 0 : index
    %c0_18 = arith.constant 0 : index
    %36 = vector.load %arg7[%c0_17, %c0_18] : memref<1x128xf32, #tpu.memory_space<vmem>>, vector<1x128xf32>
    %37 = vector.broadcast %36 : vector<1x128xf32> to vector<8x128xf32>
    %38 = arith.addf %35, %37 : vector<8x128xf32>
    %cst_19 = arith.constant 5.000000e-01 : f32
    %39 = vector.broadcast %cst_19 : f32 to vector<8x128xf32>
    %40 = arith.mulf %39, %38 : vector<8x128xf32>
    %cst_20 = arith.constant 0.707106769 : f32
    %41 = vector.broadcast %cst_20 : f32 to vector<8x128xf32>
    %42 = arith.mulf %38, %41 : vector<8x128xf32>
    %43 = math.erf %42 : vector<8x128xf32>
    %cst_21 = arith.constant 1.000000e+00 : f32
    %44 = vector.broadcast %cst_21 : f32 to vector<8x128xf32>
    %45 = arith.addf %44, %43 : vector<8x128xf32>
    %46 = arith.mulf %40, %45 : vector<8x128xf32>
    %47 = arith.truncf %46 : vector<8x128xf32> to vector<8x128xbf16>
    %c0_22 = arith.constant 0 : index
    %c0_23 = arith.constant 0 : index
    %48 = vector.load %arg8[%c0_22, %c0_23] : memref<128x128xbf16, #tpu.memory_space<vmem>>, vector<128x128xbf16>
    %cst_24 = arith.constant dense<0.000000e+00> : vector<8x128xf32>
    %49 = tpu.matmul %47, %48, %cst_24 {dimension_numbers = #tpu.dot_dimension_numbers<[1], [0], [0], [1], [0, 0, 1, 1], [], []>} : vector<8x128xbf16>, vector<128x128xbf16>, vector<8x128xf32> -> vector<8x128xf32>
    %c0_25 = arith.constant 0 : index
    %c0_26 = arith.constant 0 : index
    %50 = vector.load %arg9[%c0_25, %c0_26] : memref<1x128xf32, #tpu.memory_space<vmem>>, vector<1x128xf32>
    %51 = vector.broadcast %50 : vector<1x128xf32> to vector<8x128xf32>
    %52 = arith.addf %49, %51 : vector<8x128xf32>
    %53 = arith.truncf %52 : vector<8x128xf32> to vector<8x128xbf16>
    %c0_27 = arith.constant 0 : index
    %c0_28 = arith.constant 0 : index
    %c0_29 = arith.constant 0 : index
    %54 = vector.load %arg10[%c0_27, %c0_28, %c0_29] : memref<1x8x128xbf16, #tpu.memory_space<vmem>>, vector<1x8x128xbf16>
    %55 = vector.shape_cast %54 : vector<1x8x128xbf16> to vector<8x128xbf16>
    %56 = vector.shape_cast %53 : vector<8x128xbf16> to vector<1x8x128xbf16>
    tpu.vector_store %arg10[%c0_27, %c0_28, %c0_29], %56 {strides = array<i32>} : memref<1x8x128xbf16, #tpu.memory_space<vmem>>, vector<1x8x128xbf16>,
    return
  }
  func.func @transform_0(%arg0: i32, %arg1: i32) -> (i32, i32, i32) {
    %c0_i32 = arith.constant 0 : i32
    %c0_i32_0 = arith.constant 0 : i32
    return %arg1, %arg0, %c0_i32 : i32, i32, i32
  }
  func.func @transform_1(%arg0: i32, %arg1: i32) -> (i32, i32) {
    %c0_i32 = arith.constant 0 : i32
    %c0_i32_0 = arith.constant 0 : i32
    %c0_i32_1 = arith.constant 0 : i32
    return %c0_i32, %c0_i32_0 : i32, i32
  }
  func.func @transform_2(%arg0: i32, %arg1: i32) -> (i32, i32) {
    %c0_i32 = arith.constant 0 : i32
    %c0_i32_0 = arith.constant 0 : i32
    %c0_i32_1 = arith.constant 0 : i32
    return %c0_i32, %c0_i32_0 : i32, i32
  }
  func.func @transform_3(%arg0: i32, %arg1: i32) -> (i32, i32) {
    %c0_i32 = arith.constant 0 : i32
    %c0_i32_0 = arith.constant 0 : i32
    return %arg0, %c0_i32 : i32, i32
  }
  func.func @transform_4(%arg0: i32, %arg1: i32) -> (i32, i32) {
    %c0_i32 = arith.constant 0 : i32
    %c0_i32_0 = arith.constant 0 : i32
    %c0_i32_1 = arith.constant 0 : i32
    return %c0_i32, %c0_i32_0 : i32, i32
  }
  func.func @transform_5(%arg0: i32, %arg1: i32) -> (i32, i32) {
    %c0_i32 = arith.constant 0 : i32
    %c0_i32_0 = arith.constant 0 : i32
    %c0_i32_1 = arith.constant 0 : i32
    return %c0_i32, %c0_i32_0 : i32, i32
  }
  func.func @transform_6(%arg0: i32, %arg1: i32) -> (i32, i32) {
    %c0_i32 = arith.constant 0 : i32
    %c0_i32_0 = arith.constant 0 : i32
    %c0_i32_1 = arith.constant 0 : i32
    return %c0_i32, %c0_i32_0 : i32, i32
  }
  func.func @transform_7(%arg0: i32, %arg1: i32) -> (i32, i32) {
    %c0_i32 = arith.constant 0 : i32
    %c0_i32_0 = arith.constant 0 : i32
    %c0_i32_1 = arith.constant 0 : i32
    return %c0_i32, %c0_i32_0 : i32, i32
  }
  func.func @transform_8(%arg0: i32, %arg1: i32) -> (i32, i32, i32) {
    %c0_i32 = arith.constant 0 : i32
    %c0_i32_0 = arith.constant 0 : i32
    return %arg1, %arg0, %c0_i32 : i32, i32, i32
  }
}

</mosaic_0001>

<llo_original>
// kernel: tpu_custom_call.1
$region0: #{tpu_custom_call.1}
  #allocation0 [shape = 'u32[]', space=smem, size = 0x4, offset = 0x4, fixed_abs, tag = 'smem constant byte address 0x4 - core index']
  #allocation1 [shape = 'u32[144,128]{1,0:T(1,128)}', space=vmem, size = 0x12000, scoped, tag = 'internal scratch']
  %s0 = inlined_call_operand.hbm [shape: f32[2,16,128], index: 0, kind: input, shape index: {}]
  %s1 = inlined_call_operand.vmem [shape: f32[1,128], index: 1, kind: input, shape index: {}]
  %s2 = inlined_call_operand.vmem [shape: f32[1,128], index: 2, kind: input, shape index: {}]
  %s3 = inlined_call_operand.hbm [shape: bf16[16,128], index: 3, kind: input, shape index: {}]
  %s4 = inlined_call_operand.hbm [shape: bf16[128,128], index: 4, kind: input, shape index: {}]
  %s5 = inlined_call_operand.vmem [shape: f32[1,128], index: 5, kind: input, shape index: {}]
  %s6 = inlined_call_operand.hbm [shape: bf16[128,128], index: 6, kind: input, shape index: {}]
  %s7 = inlined_call_operand.vmem [shape: f32[1,128], index: 7, kind: input, shape index: {}]
  %s8 = inlined_call_operand.hbm [shape: bf16[2,16,128], index: 8, kind: output, shape index: {}]
  %s9 = sld [smem:[#allocation0]]
  $region81: #{tpu_custom_call.1} parent=0
    _
  %s11 = ssub.s32 1, %s9
  %s12 = scalar_select 0, %s11, %s9
  $region1: #{tpu_custom_call.1} parent=0
    #allocation2 [shape = 'u8[8192]{0}', space=vmem, size = 0x2000, scoped, tag = 'input window, operand 0']
    #allocation3 [shape = 's32[2]{0}', space=sflag, size = 0x8, scoped, tag = 'scoped memory for tpu_custom_call.1']
    #allocation4 [shape = 's32[2]{0}', space=sflag, size = 0x8, scoped, tag = 'scoped memory for tpu_custom_call.1']
    #allocation5 [shape = 'u8[4096]{0}', space=vmem, size = 0x1000, scoped, tag = 'input window, operand 3']
    #allocation6 [shape = 's32[2]{0}', space=sflag, size = 0x8, scoped, tag = 'scoped memory for tpu_custom_call.1']
    #allocation7 [shape = 'u8[32768]{0}', space=vmem, size = 0x8000, scoped, tag = 'input window, operand 4, single buffered']
    #allocation8 [shape = 'u8[32768]{0}', space=vmem, size = 0x8000, scoped, tag = 'input window, operand 6, single buffered']
    #allocation9 [shape = 's32[1]{0}', space=sflag, size = 0x4, scoped, tag = 'scoped memory for tpu_custom_call.1']
    #allocation10 [shape = 'u8[4096]{0}', space=vmem, size = 0x1000, scoped, tag = 'output window, operand 0']
    %13 = vsyncpa [#allocation3], 0
    %s14 = scalar_lea.sflag [#allocation3], 1
    %15 = vsyncpa %s14, 0
    %16 = vsyncpa [#allocation6], 0
    %s17 = scalar_lea.sflag [#allocation6], 1
    %18 = vsyncpa %s17, 0
    %19 = vsyncpa [#allocation9], 0
    %20 = vsyncpa [#allocation4], 0
    %s21 = scalar_lea.sflag [#allocation4], 1
    %22 = vsyncpa %s21, 0
    loop: start=0, step=1, limit=6
    $region2: #{tpu_custom_call.1} parent=1 // loop_pre_header
      _
    $region3: #{tpu_custom_call.1} parent=1 // loop_header
      %s24 = sphi 0, %s28
      %p25 = scmp.ge.s32.totalorder %s24, 6
      %s31 = sphi 0, %s43
      %s32 = sphi 0, %s39
      %s33 = sphi 0, %s31
      %s34 = sphi 0, %s32
      %s35 = sphi 0, %s33
      %s36 = sphi 0, %s34
      %s48 = sphi 0, %s50
      %s51 = sphi 0, %s48
      %s52 = sphi 0, %s51
      %s68 = sphi 0, %s52
      %s72 = sphi 0, %s72
      %s74 = sphi 0, %s72
      %s75 = sphi 0, %s74
      %s89 = sphi 0, %s75
      %s93 = sphi 0, %s93
      %s95 = sphi 0, %s93
      %s96 = sphi 0, %s95
      %s110 = sphi 0, %s96
      %s116 = sphi 0, %s118
      %s119 = sphi 0, %s116
      %s120 = sphi 0, %s119
      %s136 = sphi 0, %s120
      %s140 = sphi 0, %s140
      %s142 = sphi 0, %s140
      %s143 = sphi 0, %s142
      %s157 = sphi 0, %s143
      %s161 = sphi 0, %s161
      %s163 = sphi 0, %s161
      %s164 = sphi 0, %s163
      %s178 = sphi 0, %s164
      %s182 = sphi 0, %s182
      %s184 = sphi 0, %s182
      %s185 = sphi 0, %s184
      %s199 = sphi 0, %s185
      %s203 = sphi 0, %s203
      %s205 = sphi 0, %s203
      %s206 = sphi 0, %s205
      %s220 = sphi 0, %s206
      %s228 = sphi 0, %s230
      %s231 = sphi 0, %s228
      %s232 = sphi 0, %s231
      %s248 = sphi 0, %s232
    $region4: #{tpu_custom_call.1} parent=1 // loop_header_branch
      %27 = sbr.rel (%p25) target = $region8
    $region5: #{tpu_custom_call.1} parent=1 // loop_body
      %s29 = ssub.s32 %s24, 1
      %s30 = ssub.s32 %s24, 2
      %s37 = sadd.s32 1, %s32
      %p38 = scmp.ge.s32.totalorder %s37, 2
      %s39 = scalar_select %p38, 0, %s37
      %s40 = sadd.s32 1, %s31
      %s41 = scalar_select %p38, %s40, %s31
      %p42 = scmp.ge.s32.totalorder %s41, 2
      %s43 = scalar_select %p42, 0, %s41
      %s44 = ssub.s32 %s32, %s39
      %s45 = ssub.s32 %s31, %s43
      %s46 = sor.u32 %s44, %s45
      %p47 = scmp.eq.s32.totalorder %s46, 0
      %s49 = sadd.s32 %s48, 1
      %s50 = scalar_select %p47, %s48, %s49
      %p53 = pneg %p47
      %p54 = scmp.eq.s32.totalorder %s24, 3
      %p55 = por %p53, %p54
      %p56 = scmp.ne.s32.totalorder %s48, %s51
      %p57 = scmp.eq.s32.totalorder %s24, 0
      %p58 = por %p56, %p57
      %p59 = scmp.ne.s32.totalorder %s48, %s51
      %p60 = scmp.eq.s32.totalorder %s29, 3
      %p61 = por %p59, %p60
      %p62 = scmp.ne.s32.totalorder %s51, %s52
      %p63 = scmp.eq.s32.totalorder %s29, 0
      %p64 = por %p62, %p63
      %p65 = scmp.ne.s32.totalorder %s51, %s52
      %p66 = scmp.eq.s32.totalorder %s30, 3
      %p67 = por %p65, %p66
      %p69 = scmp.ne.s32.totalorder %s52, %s68
      %p70 = scmp.eq.s32.totalorder %s30, 0
      %p71 = por %p69, %p70
      %s73 = sadd.s32 %s72, 1
      %p76 = scmp.eq.s32.totalorder %s24, 3
      %p77 = scmp.ne.s32.totalorder %s72, %s74
      %p78 = scmp.eq.s32.totalorder %s24, 0
      %p79 = por %p77, %p78
      %p80 = scmp.ne.s32.totalorder %s72, %s74
      %p81 = scmp.eq.s32.totalorder %s29, 3
      %p82 = por %p80, %p81
      %p83 = scmp.ne.s32.totalorder %s74, %s75
      %p84 = scmp.eq.s32.totalorder %s29, 0
      %p85 = por %p83, %p84
      %p86 = scmp.ne.s32.totalorder %s74, %s75
      %p87 = scmp.eq.s32.totalorder %s30, 3
      %p88 = por %p86, %p87
      %p90 = scmp.ne.s32.totalorder %s75, %s89
      %p91 = scmp.eq.s32.totalorder %s30, 0
      %p92 = por %p90, %p91
      %s94 = sadd.s32 %s93, 1
      %p97 = scmp.eq.s32.totalorder %s24, 3
      %p98 = scmp.ne.s32.totalorder %s93, %s95
      %p99 = scmp.eq.s32.totalorder %s24, 0
      %p100 = por %p98, %p99
      %p101 = scmp.ne.s32.totalorder %s93, %s95
      %p102 = scmp.eq.s32.totalorder %s29, 3
      %p103 = por %p101, %p102
      %p104 = scmp.ne.s32.totalorder %s95, %s96
      %p105 = scmp.eq.s32.totalorder %s29, 0
      %p106 = por %p104, %p105
      %p107 = scmp.ne.s32.totalorder %s95, %s96
      %p108 = scmp.eq.s32.totalorder %s30, 3
      %p109 = por %p107, %p108
      %p111 = scmp.ne.s32.totalorder %s96, %s110
      %p112 = scmp.eq.s32.totalorder %s30, 0
      %p113 = por %p111, %p112
      %s114 = ssub.s32 %s31, %s43
      %p115 = scmp.eq.s32.totalorder %s114, 0
      %s117 = sadd.s32 %s116, 1
      %s118 = scalar_select %p115, %s116, %s117
      %p121 = pneg %p115
      %p122 = scmp.eq.s32.totalorder %s24, 3
      %p123 = por %p121, %p122
      %p124 = scmp.ne.s32.totalorder %s116, %s119
      %p125 = scmp.eq.s32.totalorder %s24, 0
      %p126 = por %p124, %p125
      %p127 = scmp.ne.s32.totalorder %s116, %s119
      %p128 = scmp.eq.s32.totalorder %s29, 3
      %p129 = por %p127, %p128
      %p130 = scmp.ne.s32.totalorder %s119, %s120
      %p131 = scmp.eq.s32.totalorder %s29, 0
      %p132 = por %p130, %p131
      %p133 = scmp.ne.s32.totalorder %s119, %s120
      %p134 = scmp.eq.s32.totalorder %s30, 3
      %p135 = por %p133, %p134
      %p137 = scmp.ne.s32.totalorder %s120, %s136
      %p138 = scmp.eq.s32.totalorder %s30, 0
      %p139 = por %p137, %p138
      %s141 = sadd.s32 %s140, 1
      %p144 = scmp.eq.s32.totalorder %s24, 3
      %p145 = scmp.ne.s32.totalorder %s140, %s142
      %p146 = scmp.eq.s32.totalorder %s24, 0
      %p147 = por %p145, %p146
      %p148 = scmp.ne.s32.totalorder %s140, %s142
      %p149 = scmp.eq.s32.totalorder %s29, 3
      %p150 = por %p148, %p149
      %p151 = scmp.ne.s32.totalorder %s142, %s143
      %p152 = scmp.eq.s32.totalorder %s29, 0
      %p153 = por %p151, %p152
      %p154 = scmp.ne.s32.totalorder %s142, %s143
      %p155 = scmp.eq.s32.totalorder %s30, 3
      %p156 = por %p154, %p155
      %p158 = scmp.ne.s32.totalorder %s143, %s157
      %p159 = scmp.eq.s32.totalorder %s30, 0
      %p160 = por %p158, %p159
      %s162 = sadd.s32 %s161, 1
      %p165 = scmp.eq.s32.totalorder %s24, 3
      %p166 = scmp.ne.s32.totalorder %s161, %s163
      %p167 = scmp.eq.s32.totalorder %s24, 0
      %p168 = por %p166, %p167
      %p169 = scmp.ne.s32.totalorder %s161, %s163
      %p170 = scmp.eq.s32.totalorder %s29, 3
      %p171 = por %p169, %p170
      %p172 = scmp.ne.s32.totalorder %s163, %s164
      %p173 = scmp.eq.s32.totalorder %s29, 0
      %p174 = por %p172, %p173
      %p175 = scmp.ne.s32.totalorder %s163, %s164
      %p176 = scmp.eq.s32.totalorder %s30, 3
      %p177 = por %p175, %p176
      %p179 = scmp.ne.s32.totalorder %s164, %s178
      %p180 = scmp.eq.s32.totalorder %s30, 0
      %p181 = por %p179, %p180
      %s183 = sadd.s32 %s182, 1
      %p186 = scmp.eq.s32.totalorder %s24, 3
      %p187 = scmp.ne.s32.totalorder %s182, %s184
      %p188 = scmp.eq.s32.totalorder %s24, 0
      %p189 = por %p187, %p188
      %p190 = scmp.ne.s32.totalorder %s182, %s184
      %p191 = scmp.eq.s32.totalorder %s29, 3
      %p192 = por %p190, %p191
      %p193 = scmp.ne.s32.totalorder %s184, %s185
      %p194 = scmp.eq.s32.totalorder %s29, 0
      %p195 = por %p193, %p194
      %p196 = scmp.ne.s32.totalorder %s184, %s185
      %p197 = scmp.eq.s32.totalorder %s30, 3
      %p198 = por %p196, %p197
      %p200 = scmp.ne.s32.totalorder %s185, %s199
      %p201 = scmp.eq.s32.totalorder %s30, 0
      %p202 = por %p200, %p201
      %s204 = sadd.s32 %s203, 1
      %p207 = scmp.eq.s32.totalorder %s24, 3
      %p208 = scmp.ne.s32.totalorder %s203, %s205
      %p209 = scmp.eq.s32.totalorder %s24, 0
      %p210 = por %p208, %p209
      %p211 = scmp.ne.s32.totalorder %s203, %s205
      %p212 = scmp.eq.s32.totalorder %s29, 3
      %p213 = por %p211, %p212
      %p214 = scmp.ne.s32.totalorder %s205, %s206
      %p215 = scmp.eq.s32.totalorder %s29, 0
      %p216 = por %p214, %p215
      %p217 = scmp.ne.s32.totalorder %s205, %s206
      %p218 = scmp.eq.s32.totalorder %s30, 3
      %p219 = por %p217, %p218
      %p221 = scmp.ne.s32.totalorder %s206, %s220
      %p222 = scmp.eq.s32.totalorder %s30, 0
      %p223 = por %p221, %p222
      %s224 = ssub.s32 %s32, %s39
      %s225 = ssub.s32 %s31, %s43
      %s226 = sor.u32 %s224, %s225
      %p227 = scmp.eq.s32.totalorder %s226, 0
      %s229 = sadd.s32 %s228, 1
      %s230 = scalar_select %p227, %s228, %s229
      %p233 = pneg %p227
      %p234 = scmp.eq.s32.totalorder %s24, 3
      %p235 = por %p233, %p234
      %p236 = scmp.ne.s32.totalorder %s228, %s231
      %p237 = scmp.eq.s32.totalorder %s24, 0
      %p238 = por %p236, %p237
      %p239 = scmp.ne.s32.totalorder %s228, %s231
      %p240 = scmp.eq.s32.totalorder %s29, 3
      %p241 = por %p239, %p240
      %p242 = scmp.ne.s32.totalorder %s231, %s232
      %p243 = scmp.eq.s32.totalorder %s29, 0
      %p244 = por %p242, %p243
      %p245 = scmp.ne.s32.totalorder %s231, %s232
      %p246 = scmp.eq.s32.totalorder %s30, 3
      %p247 = por %p245, %p246
      %p249 = scmp.ne.s32.totalorder %s232, %s248
      %p250 = scmp.eq.s32.totalorder %s30, 0
      %p251 = por %p249, %p250
      %p252 = scmp.le.s32.totalorder 1, %s24
      %p253 = scmp.lt.s32.totalorder %s24, 5
      %p254 = pnand %p252, %p253
      %p255 = pneg %p254
      // Predicated region
      $region9: #{tpu_custom_call.1} parent=5 // pred_check
        _
      $region10: #{tpu_custom_call.1} parent=5 // pred_check_branch
        %257 = sbr.rel (%p254) target = $region12
      $region11: #{tpu_custom_call.1} parent=5 // pred_region
        %s258 = ssub.s32 %s24, 1
        // Predicated region
        $region13: #{tpu_custom_call.1} parent=11 // pred_check
          %p259 = pneg %p85
        $region14: #{tpu_custom_call.1} parent=11 // pred_check_branch
          %261 = sbr.rel (%p259) target = $region16
        $region15: #{tpu_custom_call.1} parent=11 // pred_region
          _
        $region16: #{tpu_custom_call.1} parent=11 // pred_fallthru
          _
        // Predicated region
        $region17: #{tpu_custom_call.1} parent=11 // pred_check
          %p262 = pneg %p106
        $region18: #{tpu_custom_call.1} parent=11 // pred_check_branch
          %264 = sbr.rel (%p262) target = $region20
        $region19: #{tpu_custom_call.1} parent=11 // pred_region
          _
        $region20: #{tpu_custom_call.1} parent=11 // pred_fallthru
          _
        // Predicated region
        $region21: #{tpu_custom_call.1} parent=11 // pred_check
          %p265 = pneg %p153
        $region22: #{tpu_custom_call.1} parent=11 // pred_check_branch
          %267 = sbr.rel (%p265) target = $region24
        $region23: #{tpu_custom_call.1} parent=11 // pred_region
          %s269 = ssub.s32 1024, 1024
          %270 = vsyncadd [#allocation6], %s269
          %s271 = sshll.u32 [#allocation7], 4
          %s272 = int_to_ptr.vmem [resolvable:$true] %s271
          %277 = dma.hbm_to_vmem [thread:$0]  %s4, 1024, %s272, [#allocation6], 64, 64, 4
        $region24: #{tpu_custom_call.1} parent=11 // pred_fallthru
          _
        // Predicated region
        $region25: #{tpu_custom_call.1} parent=11 // pred_check
          %p278 = pneg %p174
        $region26: #{tpu_custom_call.1} parent=11 // pred_check_branch
          %280 = sbr.rel (%p278) target = $region28
        $region27: #{tpu_custom_call.1} parent=11 // pred_region
          _
        $region28: #{tpu_custom_call.1} parent=11 // pred_fallthru
          _
        // Predicated region
        $region29: #{tpu_custom_call.1} parent=11 // pred_check
          %p281 = pneg %p195
        $region30: #{tpu_custom_call.1} parent=11 // pred_check_branch
          %283 = sbr.rel (%p281) target = $region32
        $region31: #{tpu_custom_call.1} parent=11 // pred_region
          %s285 = ssub.s32 1024, 1024
          %286 = vsyncadd [#allocation9], %s285
          %s287 = sshll.u32 [#allocation8], 4
          %s288 = int_to_ptr.vmem [resolvable:$true] %s287
          %293 = dma.hbm_to_vmem [thread:$0]  %s6, 1024, %s288, [#allocation9], 64, 64, 4
        $region32: #{tpu_custom_call.1} parent=11 // pred_fallthru
          _
        // Predicated region
        $region33: #{tpu_custom_call.1} parent=11 // pred_check
          %p294 = pneg %p216
        $region34: #{tpu_custom_call.1} parent=11 // pred_check_branch
          %296 = sbr.rel (%p294) target = $region36
        $region35: #{tpu_custom_call.1} parent=11 // pred_region
          _
        $region36: #{tpu_custom_call.1} parent=11 // pred_fallthru
          _
      $region12: #{tpu_custom_call.1} parent=5 // pred_fallthru
        _
      %p297 = scmp.lt.s32.totalorder %s24, 4
      // Predicated region
      $region37: #{tpu_custom_call.1} parent=5 // pred_check
        %p298 = pneg %p297
      $region38: #{tpu_custom_call.1} parent=5 // pred_check_branch
        %300 = sbr.rel (%p298) target = $region40
      $region39: #{tpu_custom_call.1} parent=5 // pred_region
        // Predicated region
        $region41: #{tpu_custom_call.1} parent=39 // pred_check
          %p301 = pneg %p58
        $region42: #{tpu_custom_call.1} parent=39 // pred_check_branch
          %303 = sbr.rel (%p301) target = $region44
        $region43: #{tpu_custom_call.1} parent=39 // pred_region
          %s304 = sand.u32 %s48, 1
          %s305 = scalar_lea.sflag [#allocation3], %s304
          %s306 = sand.u32 %s48, 1
          %s307 = smul.addr %s306, 8
          %s308 = scalar_lea.vmem [#allocation2], %s307
          %s310 = ssub.s32 128, 128
          %311 = vsyncadd %s305, %s310
          %s312 = smul.addr %s32, 2
          %s313 = sadd.s32 %s31, %s312
          %s314 = smul.addr %s313, 128
          %s315 = scalar_lea.hbm %s0, %s314
          %s317 = sshll.u32 %s308, 4
          %s318 = int_to_ptr.vmem [resolvable:$true] %s317
          %320 = dma.hbm_to_vmem [thread:$0]  %s315, 128, %s318, %s305
        $region44: #{tpu_custom_call.1} parent=39 // pred_fallthru
          _
        // Predicated region
        $region45: #{tpu_custom_call.1} parent=39 // pred_check
          %p321 = pneg %p126
        $region46: #{tpu_custom_call.1} parent=39 // pred_check_branch
          %323 = sbr.rel (%p321) target = $region48
        $region47: #{tpu_custom_call.1} parent=39 // pred_region
          %s324 = sand.u32 %s24, 1
          %s325 = scalar_lea.sflag [#allocation6], %s324
          %s326 = sand.u32 %s116, 1
          %s327 = smul.addr %s326, 4
          %s328 = scalar_lea.vmem [#allocation5], %s327
          %s330 = ssub.s32 64, 64
          %331 = vsyncadd %s325, %s330
          %s332 = smul.addr %s31, 64
          %s333 = scalar_lea.hbm %s3, %s332
          %s335 = sshll.u32 %s328, 4
          %s336 = int_to_ptr.vmem [resolvable:$true] %s335
          %338 = dma.hbm_to_vmem [thread:$0]  %s333, 64, %s336, %s325
        $region48: #{tpu_custom_call.1} parent=39 // pred_fallthru
          _
      $region40: #{tpu_custom_call.1} parent=5 // pred_fallthru
        _
      %p339 = scmp.le.s32.totalorder 1, %s24
      %p340 = scmp.lt.s32.totalorder %s24, 5
      %p341 = pnand %p339, %p340
      %p342 = pneg %p341
      // Predicated region
      $region49: #{tpu_custom_call.1} parent=5 // pred_check
        _
      $region50: #{tpu_custom_call.1} parent=5 // pred_check_branch
        %344 = sbr.rel (%p341) target = $region52
      $region51: #{tpu_custom_call.1} parent=5 // pred_region
        %s345 = ssub.s32 %s24, 1
        %s346 = sand.u32 %s51, 1
        %s347 = scalar_lea.sflag [#allocation3], %s346
        %s348 = sand.u32 %s51, 1
        %s349 = smul.addr %s348, 8
        %s350 = scalar_lea.vmem [#allocation2], %s349
        // Predicated region
        $region53: #{tpu_custom_call.1} parent=51 // pred_check
          %p351 = pneg %p64
        $region54: #{tpu_custom_call.1} parent=51 // pred_check_branch
          %353 = sbr.rel (%p351) target = $region56
        $region55: #{tpu_custom_call.1} parent=51 // pred_region
          %354 = dma.done %s347, 128
        $region56: #{tpu_custom_call.1} parent=51 // pred_fallthru
          _
        %s355 = sand.u32 %s29, 1
        %s356 = scalar_lea.sflag [#allocation6], %s355
        %s357 = sand.u32 %s119, 1
        %s358 = smul.addr %s357, 4
        %s359 = scalar_lea.vmem [#allocation5], %s358
        // Predicated region
        $region57: #{tpu_custom_call.1} parent=51 // pred_check
          %p360 = pneg %p132
        $region58: #{tpu_custom_call.1} parent=51 // pred_check_branch
          %362 = sbr.rel (%p360) target = $region60
        $region59: #{tpu_custom_call.1} parent=51 // pred_region
          %363 = dma.done %s356, 64
        $region60: #{tpu_custom_call.1} parent=51 // pred_fallthru
          _
        // Predicated region
        $region61: #{tpu_custom_call.1} parent=51 // pred_check
          %p364 = pneg %p153
        $region62: #{tpu_custom_call.1} parent=51 // pred_check_branch
          %366 = sbr.rel (%p364) target = $region64
        $region63: #{tpu_custom_call.1} parent=51 // pred_region
          %367 = dma.done [#allocation6], 1024
        $region64: #{tpu_custom_call.1} parent=51 // pred_fallthru
          _
        // Predicated region
        $region65: #{tpu_custom_call.1} parent=51 // pred_check
          %p368 = pneg %p195
        $region66: #{tpu_custom_call.1} parent=51 // pred_check_branch
          %370 = sbr.rel (%p368) target = $region68
        $region67: #{tpu_custom_call.1} parent=51 // pred_region
          %371 = dma.done [#allocation9], 1024
        $region68: #{tpu_custom_call.1} parent=51 // pred_fallthru
          _
        %s372 = sand.u32 %s51, 1
        %s373 = scalar_lea.sflag [#allocation3], %s372
        %s374 = sand.u32 %s51, 1
        %s375 = smul.addr %s374, 8
        %s376 = scalar_lea.vmem [#allocation2], %s375
        %p377 = pneg %p64
        %p378 = pneg %p61
        %p379 = pneg %p85
        %p380 = pneg %p82
        %p381 = pneg %p106
        %p382 = pneg %p103
        %s383 = sand.u32 %s29, 1
        %s384 = scalar_lea.sflag [#allocation6], %s383
        %s385 = sand.u32 %s119, 1
        %s386 = smul.addr %s385, 4
        %s387 = scalar_lea.vmem [#allocation5], %s386
        %p388 = pneg %p132
        %p389 = pneg %p129
        %p390 = pneg %p153
        %p391 = pneg %p150
        %p392 = pneg %p174
        %p393 = pneg %p171
        %p394 = pneg %p195
        %p395 = pneg %p192
        %p396 = pneg %p216
        %p397 = pneg %p213
        %p398 = pneg %p244
        %p399 = pneg %p241
        %s400 = sand.u32 %s231, 1
        %s401 = scalar_lea.sflag [#allocation4], %s400
        %s402 = sand.u32 %s231, 1
        %s403 = smul.addr %s402, 4
        %s404 = scalar_lea.vmem [#allocation10], %s403
        %v406 = vld [vmem:[%s350] sm:$0xff]
        %407 = vadd.xlane.f32.xlu0 %v406
        %v408 = vpop.xlane.xlu0 %407
        %v409 = vadd.f32 %v408, 0.0
        %v410 = vmul.f32 %v409, 0.0078125
        %v411 = vsub.f32 %v406, %v410
        %v412 = vmul.f32 %v411, %v411
        %413 = vadd.xlane.f32.xlu0 %v412
        %v414 = vpop.xlane.xlu0 %413
        %v415 = vadd.f32 %v414, 0.0
        %v416 = vmul.f32 %v415, 0.0078125
        %v417 = vadd.f32 %v416, 1e-05
        %v418 = vrsqrt.pop %v417
        %v419 = vld [vmem:[%s1] sm:$0x1]
        %v420 = vld [vmem:[%s2] sm:$0x1]
        %v421 = vmul.f32 %v411, %v418
        %v423 = vlaneseq
        %v424 = vshrl.u32 %v423, 7
        %v425 = vsub.s32 0, %v424
        %v426 = vrot.slane %v419, %v425
        %v428 = vmul.f32 %v421, %v426
        %v430 = vlaneseq
        %v431 = vshrl.u32 %v430, 7
        %v432 = vsub.s32 0, %v431
        %v433 = vrot.slane %v420, %v432
        %v435 = vadd.f32 %v428, %v433
        %v436 = vld [vmem:[%s359] sm:$0xf]
        %v437 = vunpack.c.l.bf16 %v436
        %v438 = vadd.f32 %v435, %v437
        %v439 = vld [vmem:[#allocation7] sm:$0xf]
        %v440 = vld [vmem:[#allocation7 + $0x4] sm:$0xf]
        %v441 = vld [vmem:[#allocation7 + $0x8] sm:$0xf]
        %v442 = vld [vmem:[#allocation7 + $0xc] sm:$0xf]
        %v443 = vld [vmem:[#allocation7 + $0x10] sm:$0xf]
        %v444 = vld [vmem:[#allocation7 + $0x14] sm:$0xf]
        %v445 = vld [vmem:[#allocation7 + $0x18] sm:$0xf]
        %v446 = vld [vmem:[#allocation7 + $0x1c] sm:$0xf]
        %v447 = vld [vmem:[#allocation7 + $0x20] sm:$0xf]
        %v448 = vld [vmem:[#allocation7 + $0x24] sm:$0xf]
        %v449 = vld [vmem:[#allocation7 + $0x28] sm:$0xf]
        %v450 = vld [vmem:[#allocation7 + $0x2c] sm:$0xf]
        %v451 = vld [vmem:[#allocation7 + $0x30] sm:$0xf]
        %v452 = vld [vmem:[#allocation7 + $0x34] sm:$0xf]
        %v453 = vld [vmem:[#allocation7 + $0x38] sm:$0xf]
        %v454 = vld [vmem:[#allocation7 + $0x3c] sm:$0xf]
        %v455 = vpack.c.bf16 %v438, %v438
        %v456 = vld [vmem:[%s5] sm:$0x1]
        %v458 = vlaneseq
        %v459 = vshrl.u32 %v458, 7
        %v460 = vsub.s32 0, %v459
        %v461 = vrot.slane %v456, %v460
        %v479 = vunpack.c.l.b16 %v439
        %v480 = vunpack.c.l.b16 %v440
        %v481 = vunpack.c.l.b16 %v441
        %v482 = vunpack.c.l.b16 %v442
        %v483 = vunpack.c.l.b16 %v443
        %v484 = vunpack.c.l.b16 %v444
        %v485 = vunpack.c.l.b16 %v445
        %v486 = vunpack.c.l.b16 %v446
        %v487 = vunpack.c.l.b16 %v447
        %v488 = vunpack.c.l.b16 %v448
        %v489 = vunpack.c.l.b16 %v449
        %v490 = vunpack.c.l.b16 %v450
        %v491 = vunpack.c.l.b16 %v451
        %v492 = vunpack.c.l.b16 %v452
        %v493 = vunpack.c.l.b16 %v453
        %v494 = vunpack.c.l.b16 %v454
        %v495 = vpack.c.b16 %v480, %v479
        %v496 = vpack.c.b16 %v482, %v481
        %v497 = vpack.c.b16 %v484, %v483
        %v498 = vpack.c.b16 %v486, %v485
        %v499 = vpack.c.b16 %v488, %v487
        %v500 = vpack.c.b16 %v490, %v489
        %v501 = vpack.c.b16 %v492, %v491
        %v502 = vpack.c.b16 %v494, %v493
        %511 = vmatprep.subr.bf16.mxu0 0
        %512 = vmatpush1.bf16.msra.mxu0 %v502
        %513 = vmatprep.subr.bf16.mxu0 0
        %514 = vmatpush1.bf16.msra.mxu0 %v501
        %515 = vmatprep.subr.bf16.mxu0 0
        %516 = vmatpush1.bf16.msra.mxu0 %v500
        %517 = vmatprep.subr.bf16.mxu0 0
        %518 = vmatpush1.bf16.msra.mxu0 %v499
        %519 = vmatprep.subr.bf16.mxu0 0
        %520 = vmatpush1.bf16.msra.mxu0 %v498
        %521 = vmatprep.subr.bf16.mxu0 0
        %522 = vmatpush1.bf16.msra.mxu0 %v497
        %523 = vmatprep.subr.bf16.mxu0 0
        %524 = vmatpush1.bf16.msra.mxu0 %v496
        %525 = vmatprep.subr.bf16.mxu0 0
        %526 = vmatpush1.bf16.msra.mxu0 %v495
        %527 = vmatprep.subr.bf16.mxu0 0
        %528 = vmatpush2.bf16.msra.mxu0 0
        %529 = vmatprep.subr.bf16.mxu0 0
        %530 = vmatpush2.bf16.msra.mxu0 0
        %531 = vmatprep.subr.bf16.mxu0 0
        %532 = vmatpush2.bf16.msra.mxu0 0
        %533 = vmatprep.subr.bf16.mxu0 0
        %534 = vmatpush2.bf16.msra.mxu0 0
        %535 = vmatprep.subr.bf16.mxu0 0
        %536 = vmatpush2.bf16.msra.mxu0 0
        %537 = vmatprep.subr.bf16.mxu0 0
        %538 = vmatpush2.bf16.msra.mxu0 0
        %539 = vmatprep.subr.bf16.mxu0 0
        %540 = vmatpush2.bf16.msra.mxu0 0
        %541 = vmatprep.subr.bf16.mxu0 0
        %542 = vmatpush2.bf16.msra.mxu0 0
        %543 = vmatprep.mubr.bf16.mxu0 0
        %544 = vmatmul.mubr.bf16.gmra.mxu0 %v455
        %v545 = vpop.f32.mrf.mxu0
        %v546 = vadd.f32 %v461, %v545
        %v547 = vpop.f32.mrf.mxu0
        %v548 = vpop.f32.mrf.mxu0
        %v549 = vpop.f32.mrf.mxu0
        %550 = vdwg.mxu0
        %v551 = vmul.f32 %v546, 0.5
        %v552 = vmul.f32 %v546, 0.70710677
        %v553 = verf.f32.pop %v552
        %v554 = vadd.f32 %v553, 1.0
        %v555 = vmul.f32 %v551, %v554
        %v556 = vpack.c.bf16 %v555, %v555
        %v557 = vld [vmem:[#allocation8] sm:$0xf]
        %v558 = vld [vmem:[#allocation8 + $0x4] sm:$0xf]
        %v559 = vld [vmem:[#allocation8 + $0x8] sm:$0xf]
        %v560 = vld [vmem:[#allocation8 + $0xc] sm:$0xf]
        %v561 = vld [vmem:[#allocation8 + $0x10] sm:$0xf]
        %v562 = vld [vmem:[#allocation8 + $0x14] sm:$0xf]
        %v563 = vld [vmem:[#allocation8 + $0x18] sm:$0xf]
        %v564 = vld [vmem:[#allocation8 + $0x1c] sm:$0xf]
        %v565 = vld [vmem:[#allocation8 + $0x20] sm:$0xf]
        %v566 = vld [vmem:[#allocation8 + $0x24] sm:$0xf]
        %v567 = vld [vmem:[#allocation8 + $0x28] sm:$0xf]
        %v568 = vld [vmem:[#allocation8 + $0x2c] sm:$0xf]
        %v569 = vld [vmem:[#allocation8 + $0x30] sm:$0xf]
        %v570 = vld [vmem:[#allocation8 + $0x34] sm:$0xf]
        %v571 = vld [vmem:[#allocation8 + $0x38] sm:$0xf]
        %v572 = vld [vmem:[#allocation8 + $0x3c] sm:$0xf]
        %v573 = vld [vmem:[%s7] sm:$0x1]
        %v575 = vlaneseq
        %v576 = vshrl.u32 %v575, 7
        %v577 = vsub.s32 0, %v576
        %v578 = vrot.slane %v573, %v577
        %v596 = vunpack.c.l.b16 %v557
        %v597 = vunpack.c.l.b16 %v558
        %v598 = vunpack.c.l.b16 %v559
        %v599 = vunpack.c.l.b16 %v560
        %v600 = vunpack.c.l.b16 %v561
        %v601 = vunpack.c.l.b16 %v562
        %v602 = vunpack.c.l.b16 %v563
        %v603 = vunpack.c.l.b16 %v564
        %v604 = vunpack.c.l.b16 %v565
        %v605 = vunpack.c.l.b16 %v566
        %v606 = vunpack.c.l.b16 %v567
        %v607 = vunpack.c.l.b16 %v568
        %v608 = vunpack.c.l.b16 %v569
        %v609 = vunpack.c.l.b16 %v570
        %v610 = vunpack.c.l.b16 %v571
        %v611 = vunpack.c.l.b16 %v572
        %v612 = vpack.c.b16 %v597, %v596
        %v613 = vpack.c.b16 %v599, %v598
        %v614 = vpack.c.b16 %v601, %v600
        %v615 = vpack.c.b16 %v603, %v602
        %v616 = vpack.c.b16 %v605, %v604
        %v617 = vpack.c.b16 %v607, %v606
        %v618 = vpack.c.b16 %v609, %v608
        %v619 = vpack.c.b16 %v611, %v610
        %628 = vmatprep.subr.bf16.mxu0 0
        %629 = vmatpush1.bf16.msra.mxu0 %v619
        %630 = vmatprep.subr.bf16.mxu0 0
        %631 = vmatpush1.bf16.msra.mxu0 %v618
        %632 = vmatprep.subr.bf16.mxu0 0
        %633 = vmatpush1.bf16.msra.mxu0 %v617
        %634 = vmatprep.subr.bf16.mxu0 0
        %635 = vmatpush1.bf16.msra.mxu0 %v616
        %636 = vmatprep.subr.bf16.mxu0 0
        %637 = vmatpush1.bf16.msra.mxu0 %v615
        %638 = vmatprep.subr.bf16.mxu0 0
        %639 = vmatpush1.bf16.msra.mxu0 %v614
        %640 = vmatprep.subr.bf16.mxu0 0
        %641 = vmatpush1.bf16.msra.mxu0 %v613
        %642 = vmatprep.subr.bf16.mxu0 0
        %643 = vmatpush1.bf16.msra.mxu0 %v612
        %644 = vmatprep.subr.bf16.mxu0 0
        %645 = vmatpush2.bf16.msra.mxu0 0
        %646 = vmatprep.subr.bf16.mxu0 0
        %647 = vmatpush2.bf16.msra.mxu0 0
        %648 = vmatprep.subr.bf16.mxu0 0
        %649 = vmatpush2.bf16.msra.mxu0 0
        %650 = vmatprep.subr.bf16.mxu0 0
        %651 = vmatpush2.bf16.msra.mxu0 0
        %652 = vmatprep.subr.bf16.mxu0 0
        %653 = vmatpush2.bf16.msra.mxu0 0
        %654 = vmatprep.subr.bf16.mxu0 0
        %655 = vmatpush2.bf16.msra.mxu0 0
        %656 = vmatprep.subr.bf16.mxu0 0
        %657 = vmatpush2.bf16.msra.mxu0 0
        %658 = vmatprep.subr.bf16.mxu0 0
        %659 = vmatpush2.bf16.msra.mxu0 0
        %660 = vmatprep.mubr.bf16.mxu0 0
        %661 = vmatmul.mubr.bf16.gmra.mxu0 %v556
        %v662 = vpop.f32.mrf.mxu0
        %v663 = vadd.f32 %v578, %v662
        %v664 = vpop.f32.mrf.mxu0
        %v665 = vpop.f32.mrf.mxu0
        %v666 = vpop.f32.mrf.mxu0
        %667 = vdwg.mxu0
        %v668 = vpack.c.bf16 %v663, %v663
        %669 = vst [vmem:[%s404] sm:$0xf] %v668
        %s670 = sand.u32 %s231, 1
        %s671 = scalar_lea.sflag [#allocation4], %s670
        %s672 = sand.u32 %s231, 1
        %s673 = smul.addr %s672, 4
        %s674 = scalar_lea.vmem [#allocation10], %s673
        // Predicated region
        $region69: #{tpu_custom_call.1} parent=51 // pred_check
          %p675 = pneg %p241
        $region70: #{tpu_custom_call.1} parent=51 // pred_check_branch
          %677 = sbr.rel (%p675) target = $region72
        $region71: #{tpu_custom_call.1} parent=51 // pred_region
          %s679 = ssub.s32 64, 64
          %680 = vsyncadd %s671, %s679
          %s681 = smul.addr %s34, 2
          %s682 = sadd.s32 %s33, %s681
          %s683 = smul.addr %s682, 64
          %s684 = scalar_lea.hbm %s8, %s683
          %s686 = sshll.u32 %s674, 4
          %s687 = int_to_ptr.vmem [resolvable:$true] %s686
          %689 = dma.vmem_to_hbm [thread:$0]  %s687, 64, %s684, %s671
        $region72: #{tpu_custom_call.1} parent=51 // pred_fallthru
          _
      $region52: #{tpu_custom_call.1} parent=5 // pred_fallthru
        _
      %p690 = scmp.le.s32.totalorder 2, %s24
      // Predicated region
      $region73: #{tpu_custom_call.1} parent=5 // pred_check
        %p691 = pneg %p690
      $region74: #{tpu_custom_call.1} parent=5 // pred_check_branch
        %693 = sbr.rel (%p691) target = $region76
      $region75: #{tpu_custom_call.1} parent=5 // pred_region
        %s694 = ssub.s32 %s24, 2
        // Predicated region
        $region77: #{tpu_custom_call.1} parent=75 // pred_check
          %p695 = pneg %p247
        $region78: #{tpu_custom_call.1} parent=75 // pred_check_branch
          %697 = sbr.rel (%p695) target = $region80
        $region79: #{tpu_custom_call.1} parent=75 // pred_region
          %s698 = sand.u32 %s232, 1
          %s699 = scalar_lea.sflag [#allocation4], %s698
          %s700 = sand.u32 %s232, 1
          %s701 = smul.addr %s700, 4
          %s702 = scalar_lea.vmem [#allocation10], %s701
          %703 = dma.done %s699, 64
        $region80: #{tpu_custom_call.1} parent=75 // pred_fallthru
          _
      $region76: #{tpu_custom_call.1} parent=5 // pred_fallthru
        _
    $region6: #{tpu_custom_call.1} parent=1 // loop_footer
      %s28 = sadd.s32 1, %s24
    $region7: #{tpu_custom_call.1} parent=1 // loop_footer_branch
      %23 = sbr.rel target = $region3
    $region8: #{tpu_custom_call.1} parent=1 // loop_exit
      _
    %704 = vsyncpa [#allocation3], 1
    %s705 = scalar_lea.sflag [#allocation3], 1
    %706 = vsyncpa %s705, 1
    %707 = vsyncpa [#allocation6], 1
    %s708 = scalar_lea.sflag [#allocation6], 1
    %709 = vsyncpa %s708, 1
    %710 = vsyncpa [#allocation9], 1
    %711 = vsyncpa [#allocation4], 1
    %s712 = scalar_lea.sflag [#allocation4], 1
    %713 = vsyncpa %s712, 1

</llo_original>
